<compile_context>
chip_gen: v6e
topology: v6e:2x2x1
jax: 0.10.0
libtpu: 0.0.40
codegen_flags: <defaults>
</compile_context>

<pallas_src>
import functools
from typing import NamedTuple, Optional

import jax
import jax.numpy as jnp
from jax.experimental import pallas as pl
from jax.experimental.pallas import tpu as pltpu


def _round_up(v: int, m: int) -> int:
    return ((v + m - 1) // m) * m


# --------------------------------------------------------------------------- #
# Kernel
# --------------------------------------------------------------------------- #
def _complex_linear_kernel(xr_ref, xi_ref, wr_ref, ws_ref, wd_ref, br_ref, bi_ref,
                           or_ref, oi_ref):
    """One (tm, tn) output tile; K is the trailing ("arbitrary") grid axis.

    The f32 output blocks are resident across the K axis and serve as the
    accumulators directly (no VMEM scratch).
    """
    k = pl.program_id(2)

    @pl.when(k == 0)
    def _init():
        or_ref[...] = jnp.zeros_like(or_ref)
        oi_ref[...] = jnp.zeros_like(oi_ref)

    xr = xr_ref[...]                 # (tm, tk) in compute dtype (bf16 default)
    xi = xi_ref[...]
    xs = xr + xi                     # cheap VPU add; VALU has slack here

    # Gauss 3-matmul complex product; MXU results accumulated in f32.
    t1 = jnp.dot(xs, wr_ref[...], preferred_element_type=jnp.float32)
    t2 = jnp.dot(xi, ws_ref[...], preferred_element_type=jnp.float32)
    t3 = jnp.dot(xr, wd_ref[...], preferred_element_type=jnp.float32)

    # Consume each result as it drains to limit live (tm, tn) f32 temporaries.
    or_ref[...] += t1
    oi_ref[...] += t1
    or_ref[...] -= t2
    oi_ref[...] += t3

    @pl.when(k == pl.num_programs(2) - 1)
    def _epilogue():
        or_ref[...] += br_ref[...]   # (1, tn) f32, broadcasts over rows
        oi_ref[...] += bi_ref[...]


# --------------------------------------------------------------------------- #
# One-time weight preprocessing (hoisted out of the per-call jit path)
# --------------------------------------------------------------------------- #
class ComplexLinearParams(NamedTuple):
    wr_t: jax.Array        # (K_p, M_p)  W_r^T                   (compute dtype)
    ws_t: jax.Array        # (K_p, M_p)  (W_r + W_i)^T           (compute dtype)
    wd_t: jax.Array        # (K_p, M_p)  (W_i - W_r)^T           (compute dtype)
    br: jax.Array          # (1, M_p) f32
    bi: jax.Array          # (1, M_p) f32
    out_features: int
    tn: int
    tk: int


def prepare_complex_linear_params(w_real, w_imag, b_real=None, b_imag=None, *,
                                  tn: int = 512, tk: Optional[int] = None,
                                  compute_dtype=jnp.bfloat16) -> ComplexLinearParams:
    assert w_real.shape == w_imag.shape and w_real.ndim == 2
    m, k = w_real.shape
    cdt = jnp.dtype(compute_dtype)
    if tk is None:
        tk = 1024 if cdt.itemsize == 2 else 512

    tn_eff = min(tn, _round_up(m, 128))     # lane dim of output / weights
    tk_eff = min(tk, _round_up(k, 128))     # contraction dim
    m_p = _round_up(m, tn_eff)
    k_p = _round_up(k, tk_eff)

    if b_real is None:
        b_real = jnp.zeros((m,), jnp.float32)
    if b_imag is None:
        b_imag = jnp.zeros((m,), jnp.float32)

    w_real = w_real.astype(jnp.float32)
    w_imag = w_imag.astype(jnp.float32)

    def prep_w(w):
        w = jnp.pad(w, ((0, m_p - m), (0, k_p - k)))   # (M_p, K_p), zeros inert
        return jnp.asarray(w.T, dtype=cdt)             # (K_p, M_p)

    def prep_b(b):
        return jnp.pad(b.astype(jnp.float32), (0, m_p - m)).reshape(1, m_p)

    return ComplexLinearParams(
        wr_t=prep_w(w_real),
        ws_t=prep_w(w_real + w_imag),
        wd_t=prep_w(w_imag - w_real),
        br=prep_b(b_real),
        bi=prep_b(b_imag),
        out_features=m,
        tn=tn_eff,
        tk=tk_eff,
    )


# --------------------------------------------------------------------------- #
# Forward
# --------------------------------------------------------------------------- #
@functools.partial(jax.jit, static_argnames=("out_features", "tm", "tn", "tk"))
def _complex_linear_fwd(x_real, x_imag, wr_t, ws_t, wd_t, br, bi, *,
                        out_features: int, tm: int, tn: int, tk: int):
    assert x_real.shape == x_imag.shape and x_real.ndim == 2
    n, k = x_real.shape
    k_p, m_p = wr_t.shape
    cdt = wr_t.dtype
    out_dtype = x_real.dtype

    # 16-row sublane packing for 16-bit MXU operands, 8 for f32.
    sub = 16 if jnp.dtype(cdt).itemsize == 2 else 8
    tm_eff = min(tm, _round_up(n, sub))
    n_p = _round_up(n, tm_eff)

    def prep_x(x):
        x = x.astype(cdt)
        if (n_p, k_p) != (n, k):
            x = jnp.pad(x, ((0, n_p - n), (0, k_p - k)))
        return x

    xr = prep_x(x_real)
    xi = prep_x(x_imag)

    tn_eff = tn
    grid_i = n_p // tm_eff
    grid_j = m_p // tn_eff
    # v7x has 2 TensorCores: make sure the "parallel" sub-grid has >= 2 points
    # whenever the output is wide enough to split.
    if grid_i * grid_j == 1 and tn_eff >= 256:
        tn_eff //= 2
        grid_j = m_p // tn_eff
    grid_k = k_p // tk
    grid = (grid_i, grid_j, grid_k)

    flops = 2 * 3 * n_p * m_p * k_p
    bytes_accessed = (
        2 * n_p * k_p * cdt.itemsize          # x_r, x_i
        + 3 * k_p * m_p * cdt.itemsize        # three weight slabs
        + 2 * n_p * m_p * 4                   # f32 outputs
    )

    out_r, out_i = pl.pallas_call(
        _complex_linear_kernel,
        out_shape=(jax.ShapeDtypeStruct((n_p, m_p), jnp.float32),
                   jax.ShapeDtypeStruct((n_p, m_p), jnp.float32)),
        grid_spec=pltpu.PrefetchScalarGridSpec(
            num_scalar_prefetch=0,
            grid=grid,
            in_specs=[
                pl.BlockSpec((tm_eff, tk), lambda i, j, kk: (i, kk)),   # x_real
                pl.BlockSpec((tm_eff, tk), lambda i, j, kk: (i, kk)),   # x_imag
                pl.BlockSpec((tk, tn_eff), lambda i, j, kk: (kk, j)),   # W_r^T
                pl.BlockSpec((tk, tn_eff), lambda i, j, kk: (kk, j)),   # (W_r+W_i)^T
                pl.BlockSpec((tk, tn_eff), lambda i, j, kk: (kk, j)),   # (W_i-W_r)^T
                pl.BlockSpec((1, tn_eff), lambda i, j, kk: (0, j)),     # b_real
                pl.BlockSpec((1, tn_eff), lambda i, j, kk: (0, j)),     # b_imag
            ],
            out_specs=[
                pl.BlockSpec((tm_eff, tn_eff), lambda i, j, kk: (i, j)),  # real
                pl.BlockSpec((tm_eff, tn_eff), lambda i, j, kk: (i, j)),  # imag
            ],
        ),
        compiler_params=pltpu.CompilerParams(
            dimension_semantics=("parallel", "parallel", "arbitrary"),
            vmem_limit_bytes=48 * 1024 * 1024,
        ),
        cost_estimate=pl.CostEstimate(
            flops=flops, transcendentals=0, bytes_accessed=bytes_accessed),
    )(xr, xi, wr_t, ws_t, wd_t, br, bi)

    out_r = out_r[:n, :out_features].astype(out_dtype)
    out_i = out_i[:n, :out_features].astype(out_dtype)
    return out_r, out_i


def complex_linear_apply(x_real, x_imag, params: ComplexLinearParams, *, tm: int = 256):
    """Forward with pre-prepared weights (use this in loops / layers)."""
    return _complex_linear_fwd(
        x_real, x_imag, params.wr_t, params.ws_t, params.wd_t, params.br, params.bi,
        out_features=params.out_features, tm=tm, tn=params.tn, tk=params.tk)


def complex_linear(x_real, x_imag, w_real, w_imag, b_real=None, b_imag=None, *,
                   compute_dtype=jnp.bfloat16, tm: int = 256, tn: int = 512,
                   tk: Optional[int] = None):
    """One-shot convenience forward (prepares weights on every call)."""
    params = prepare_complex_linear_params(
        w_real, w_imag, b_real, b_imag, tn=tn, tk=tk, compute_dtype=compute_dtype)
    return complex_linear_apply(x_real, x_imag, params, tm=tm)


# --------------------------------------------------------------------------- #
# Self-test
# --------------------------------------------------------------------------- #
def _reference(x_real, x_imag, w_real, w_imag, b_real, b_imag):
    r = x_real @ w_real.T - x_imag @ w_imag.T + b_real[None, :]
    i = x_real @ w_imag.T + x_imag @ w_real.T + b_imag[None, :]
    return r, i


def _xavier_uniform(key, out_f, in_f):
    bound = (6.0 / (in_f + out_f)) ** 0.5
    return jax.random.uniform(key, (out_f, in_f), jnp.float32, -bound, bound)


def _run_case(key, batch, in_features, out_features, compute_dtype, atol, rtol):
    k_xr, k_xi, k_wr, k_wi = jax.random.split(key, 4)
    x_real = jax.random.normal(k_xr, (batch, in_features), jnp.float32)
    x_imag = jax.random.normal(k_xi, (batch, in_features), jnp.float32)
    w_real = _xavier_uniform(k_wr, out_features, in_features)
    w_imag = _xavier_uniform(k_wi, out_features, in_features)
    # PyTorch init zeros the biases; use a small deterministic ramp so the
    # bias-add path is actually exercised.
    ramp = jnp.arange(out_features, dtype=jnp.float32)
    b_real = 0.01 * ramp
    b_imag = -0.01 * ramp

    params = prepare_complex_linear_params(
        w_real, w_imag, b_real, b_imag, compute_dtype=compute_dtype)
    out_r, out_i = complex_linear_apply(x_real, x_imag, params)
    jax.block_until_ready((out_r, out_i))

    ref_r, ref_i = _reference(x_real, x_imag, w_real, w_imag, b_real, b_imag)
    assert out_r.shape == ref_r.shape and out_i.shape == ref_i.shape
    assert jnp.allclose(out_r, ref_r, atol=atol, rtol=rtol), \
        f"real mismatch: {float(jnp.max(jnp.abs(out_r - ref_r)))}"
    assert jnp.allclose(out_i, ref_i, atol=atol, rtol=rtol), \
        f"imag mismatch: {float(jnp.max(jnp.abs(out_i - ref_i)))}"


if __name__ == "__main__":
    key = jax.random.PRNGKey(0)
    k0, k1, k2 = jax.random.split(key, 3)

    # f32 MXU path, aligned shapes.
    _run_case(k0, batch=8, in_features=256, out_features=128,
              compute_dtype=jnp.float32, atol=2e-2, rtol=2e-2)
    # Default bf16 MXU operands with f32 accumulation (fast path).
    _run_case(k1, batch=8, in_features=256, out_features=128,
              compute_dtype=jnp.bfloat16, atol=5e-2, rtol=5e-2)
    # Unaligned shapes exercising the zero-padding path.
    _run_case(k2, batch=5, in_features=100, out_features=96,
              compute_dtype=jnp.bfloat16, atol=5e-2, rtol=5e-2)

    print("KERNEL_OK")
</pallas_src>

<mosaic_0001>
module attributes {stable_mosaic.version = 11 : i64} {
  func.func @_complex_linear_kernel(%arg0: i32, %arg1: i32, %arg2: i32, %arg3: memref<8x256xf32, #tpu.memory_space<vmem>>, %arg4: memref<8x256xf32, #tpu.memory_space<vmem>>, %arg5: memref<256x128xf32, #tpu.memory_space<vmem>>, %arg6: memref<256x128xf32, #tpu.memory_space<vmem>>, %arg7: memref<256x128xf32, #tpu.memory_space<vmem>>, %arg8: memref<1x128xf32, #tpu.memory_space<vmem>>, %arg9: memref<1x128xf32, #tpu.memory_space<vmem>>, %arg10: memref<8x128xf32, #tpu.memory_space<vmem>>, %arg11: memref<8x128xf32, #tpu.memory_space<vmem>>) attributes {dimension_semantics = [#tpu.dimension_semantics<parallel>, #tpu.dimension_semantics<parallel>, #tpu.dimension_semantics<arbitrary>], iteration_bounds = array<i64: 1, 1, 1>, scalar_prefetch = 0 : i64, scratch_operands = 0 : i64, tpu.core_type = #tpu.core_type<tc>, window_params = [{transform_indices = @transform_0, window_bounds = array<i64: 8, 256>}, {transform_indices = @transform_1, window_bounds = array<i64: 8, 256>}, {transform_indices = @transform_2, window_bounds = array<i64: 256, 128>}, {transform_indices = @transform_3, window_bounds = array<i64: 256, 128>}, {transform_indices = @transform_4, window_bounds = array<i64: 256, 128>}, {transform_indices = @transform_5, window_bounds = array<i64: 1, 128>}, {transform_indices = @transform_6, window_bounds = array<i64: 1, 128>}, {transform_indices = @transform_7, window_bounds = array<i64: 8, 128>}, {transform_indices = @transform_8, window_bounds = array<i64: 8, 128>}]} {
    %c0_i32 = arith.constant 0 : i32
    %0 = arith.cmpi eq, %arg2, %c0_i32 : i32
    %1 = arith.extui %0 : i1 to i32
    %c0_i32_0 = arith.constant 0 : i32
    %2 = arith.cmpi ne, %1, %c0_i32_0 : i32
    scf.if %2 {
      %cst_30 = arith.constant 0.000000e+00 : f32
      %27 = vector.broadcast %cst_30 : f32 to vector<8x128xf32>
      %c0_31 = arith.constant 0 : index
      %c0_32 = arith.constant 0 : index
      %28 = vector.load %arg10[%c0_31, %c0_32] : memref<8x128xf32, #tpu.memory_space<vmem>>, vector<8x128xf32>
      tpu.vector_store %arg10[%c0_31, %c0_32], %27 {strides = array<i32>} : memref<8x128xf32, #tpu.memory_space<vmem>>, vector<8x128xf32>,
      %cst_33 = arith.constant 0.000000e+00 : f32
      %29 = vector.broadcast %cst_33 : f32 to vector<8x128xf32>
      %c0_34 = arith.constant 0 : index
      %c0_35 = arith.constant 0 : index
      %30 = vector.load %arg11[%c0_34, %c0_35] : memref<8x128xf32, #tpu.memory_space<vmem>>, vector<8x128xf32>
      tpu.vector_store %arg11[%c0_34, %c0_35], %29 {strides = array<i32>} : memref<8x128xf32, #tpu.memory_space<vmem>>, vector<8x128xf32>,
    } else {
    }
    %c0 = arith.constant 0 : index
    %c0_1 = arith.constant 0 : index
    %3 = vector.load %arg3[%c0, %c0_1] : memref<8x256xf32, #tpu.memory_space<vmem>>, vector<8x256xf32>
    %c0_2 = arith.constant 0 : index
    %c0_3 = arith.constant 0 : index
    %4 = vector.load %arg4[%c0_2, %c0_3] : memref<8x256xf32, #tpu.memory_space<vmem>>, vector<8x256xf32>
    %5 = arith.addf %3, %4 : vector<8x256xf32>
    %c0_4 = arith.constant 0 : index
    %c0_5 = arith.constant 0 : index
    %6 = vector.load %arg5[%c0_4, %c0_5] : memref<256x128xf32, #tpu.memory_space<vmem>>, vector<256x128xf32>
    %cst = arith.constant dense<0.000000e+00> : vector<8x128xf32>
    %7 = tpu.matmul %5, %6, %cst {dimension_numbers = #tpu.dot_dimension_numbers<[1], [0], [0], [1], [0, 0, 1, 1], [], []>} : vector<8x256xf32>, vector<256x128xf32>, vector<8x128xf32> -> vector<8x128xf32>
    %c0_6 = arith.constant 0 : index
    %c0_7 = arith.constant 0 : index
    %8 = vector.load %arg6[%c0_6, %c0_7] : memref<256x128xf32, #tpu.memory_space<vmem>>, vector<256x128xf32>
    %cst_8 = arith.constant dense<0.000000e+00> : vector<8x128xf32>
    %9 = tpu.matmul %4, %8, %cst_8 {dimension_numbers = #tpu.dot_dimension_numbers<[1], [0], [0], [1], [0, 0, 1, 1], [], []>} : vector<8x256xf32>, vector<256x128xf32>, vector<8x128xf32> -> vector<8x128xf32>
    %c0_9 = arith.constant 0 : index
    %c0_10 = arith.constant 0 : index
    %10 = vector.load %arg7[%c0_9, %c0_10] : memref<256x128xf32, #tpu.memory_space<vmem>>, vector<256x128xf32>
    %cst_11 = arith.constant dense<0.000000e+00> : vector<8x128xf32>
    %11 = tpu.matmul %3, %10, %cst_11 {dimension_numbers = #tpu.dot_dimension_numbers<[1], [0], [0], [1], [0, 0, 1, 1], [], []>} : vector<8x256xf32>, vector<256x128xf32>, vector<8x128xf32> -> vector<8x128xf32>
    %c0_12 = arith.constant 0 : index
    %c0_13 = arith.constant 0 : index
    %12 = vector.load %arg10[%c0_12, %c0_13] : memref<8x128xf32, #tpu.memory_space<vmem>>, vector<8x128xf32>
    %13 = arith.addf %12, %7 : vector<8x128xf32>
    %c0_14 = arith.constant 0 : index
    %c0_15 = arith.constant 0 : index
    %14 = vector.load %arg10[%c0_14, %c0_15] : memref<8x128xf32, #tpu.memory_space<vmem>>, vector<8x128xf32>
    tpu.vector_store %arg10[%c0_14, %c0_15], %13 {strides = array<i32>} : memref<8x128xf32, #tpu.memory_space<vmem>>, vector<8x128xf32>,
    %c0_16 = arith.constant 0 : index
    %c0_17 = arith.constant 0 : index
    %15 = vector.load %arg11[%c0_16, %c0_17] : memref<8x128xf32, #tpu.memory_space<vmem>>, vector<8x128xf32>
    %16 = arith.addf %15, %7 : vector<8x128xf32>
    %c0_18 = arith.constant 0 : index
    %c0_19 = arith.constant 0 : index
    %17 = vector.load %arg11[%c0_18, %c0_19] : memref<8x128xf32, #tpu.memory_space<vmem>>, vector<8x128xf32>
    tpu.vector_store %arg11[%c0_18, %c0_19], %16 {strides = array<i32>} : memref<8x128xf32, #tpu.memory_space<vmem>>, vector<8x128xf32>,
    %c0_20 = arith.constant 0 : index
    %c0_21 = arith.constant 0 : index
    %18 = vector.load %arg10[%c0_20, %c0_21] : memref<8x128xf32, #tpu.memory_space<vmem>>, vector<8x128xf32>
    %19 = arith.subf %18, %9 : vector<8x128xf32>
    %c0_22 = arith.constant 0 : index
    %c0_23 = arith.constant 0 : index
    %20 = vector.load %arg10[%c0_22, %c0_23] : memref<8x128xf32, #tpu.memory_space<vmem>>, vector<8x128xf32>
    tpu.vector_store %arg10[%c0_22, %c0_23], %19 {strides = array<i32>} : memref<8x128xf32, #tpu.memory_space<vmem>>, vector<8x128xf32>,
    %c0_24 = arith.constant 0 : index
    %c0_25 = arith.constant 0 : index
    %21 = vector.load %arg11[%c0_24, %c0_25] : memref<8x128xf32, #tpu.memory_space<vmem>>, vector<8x128xf32>
    %22 = arith.addf %21, %11 : vector<8x128xf32>
    %c0_26 = arith.constant 0 : index
    %c0_27 = arith.constant 0 : index
    %23 = vector.load %arg11[%c0_26, %c0_27] : memref<8x128xf32, #tpu.memory_space<vmem>>, vector<8x128xf32>
    tpu.vector_store %arg11[%c0_26, %c0_27], %22 {strides = array<i32>} : memref<8x128xf32, #tpu.memory_space<vmem>>, vector<8x128xf32>,
    %c0_i32_28 = arith.constant 0 : i32
    %24 = arith.cmpi eq, %arg2, %c0_i32_28 : i32
    %25 = arith.extui %24 : i1 to i32
    %c0_i32_29 = arith.constant 0 : i32
    %26 = arith.cmpi ne, %25, %c0_i32_29 : i32
    scf.if %26 {
      %c0_30 = arith.constant 0 : index
      %c0_31 = arith.constant 0 : index
      %27 = vector.load %arg10[%c0_30, %c0_31] : memref<8x128xf32, #tpu.memory_space<vmem>>, vector<8x128xf32>
      %c0_32 = arith.constant 0 : index
      %c0_33 = arith.constant 0 : index
      %28 = vector.load %arg8[%c0_32, %c0_33] : memref<1x128xf32, #tpu.memory_space<vmem>>, vector<1x128xf32>
      %29 = vector.broadcast %28 : vector<1x128xf32> to vector<8x128xf32>
      %30 = arith.addf %27, %29 : vector<8x128xf32>
      %c0_34 = arith.constant 0 : index
      %c0_35 = arith.constant 0 : index
      %31 = vector.load %arg10[%c0_34, %c0_35] : memref<8x128xf32, #tpu.memory_space<vmem>>, vector<8x128xf32>
      tpu.vector_store %arg10[%c0_34, %c0_35], %30 {strides = array<i32>} : memref<8x128xf32, #tpu.memory_space<vmem>>, vector<8x128xf32>,
      %c0_36 = arith.constant 0 : index
      %c0_37 = arith.constant 0 : index
      %32 = vector.load %arg11[%c0_36, %c0_37] : memref<8x128xf32, #tpu.memory_space<vmem>>, vector<8x128xf32>
      %c0_38 = arith.constant 0 : index
      %c0_39 = arith.constant 0 : index
      %33 = vector.load %arg9[%c0_38, %c0_39] : memref<1x128xf32, #tpu.memory_space<vmem>>, vector<1x128xf32>
      %34 = vector.broadcast %33 : vector<1x128xf32> to vector<8x128xf32>
      %35 = arith.addf %32, %34 : vector<8x128xf32>
      %c0_40 = arith.constant 0 : index
      %c0_41 = arith.constant 0 : index
      %36 = vector.load %arg11[%c0_40, %c0_41] : memref<8x128xf32, #tpu.memory_space<vmem>>, vector<8x128xf32>
      tpu.vector_store %arg11[%c0_40, %c0_41], %35 {strides = array<i32>} : memref<8x128xf32, #tpu.memory_space<vmem>>, vector<8x128xf32>,
    } else {
    }
    return
  }
  func.func @transform_0(%arg0: i32, %arg1: i32, %arg2: i32) -> (i32, i32) {
    %c0_i32 = arith.constant 0 : i32
    return %arg0, %arg2 : i32, i32
  }
  func.func @transform_1(%arg0: i32, %arg1: i32, %arg2: i32) -> (i32, i32) {
    %c0_i32 = arith.constant 0 : i32
    return %arg0, %arg2 : i32, i32
  }
  func.func @transform_2(%arg0: i32, %arg1: i32, %arg2: i32) -> (i32, i32) {
    %c0_i32 = arith.constant 0 : i32
    return %arg2, %arg1 : i32, i32
  }
  func.func @transform_3(%arg0: i32, %arg1: i32, %arg2: i32) -> (i32, i32) {
    %c0_i32 = arith.constant 0 : i32
    return %arg2, %arg1 : i32, i32
  }
  func.func @transform_4(%arg0: i32, %arg1: i32, %arg2: i32) -> (i32, i32) {
    %c0_i32 = arith.constant 0 : i32
    return %arg2, %arg1 : i32, i32
  }
  func.func @transform_5(%arg0: i32, %arg1: i32, %arg2: i32) -> (i32, i32) {
    %c0_i32 = arith.constant 0 : i32
    %c0_i32_0 = arith.constant 0 : i32
    return %c0_i32, %arg1 : i32, i32
  }
  func.func @transform_6(%arg0: i32, %arg1: i32, %arg2: i32) -> (i32, i32) {
    %c0_i32 = arith.constant 0 : i32
    %c0_i32_0 = arith.constant 0 : i32
    return %c0_i32, %arg1 : i32, i32
  }
  func.func @transform_7(%arg0: i32, %arg1: i32, %arg2: i32) -> (i32, i32) {
    %c0_i32 = arith.constant 0 : i32
    return %arg0, %arg1 : i32, i32
  }
  func.func @transform_8(%arg0: i32, %arg1: i32, %arg2: i32) -> (i32, i32) {
    %c0_i32 = arith.constant 0 : i32
    return %arg0, %arg1 : i32, i32
  }
}

</mosaic_0001>

<llo_original>
// kernel: _complex_linear_fwd.1
$region0: #{_complex_linear_fwd.1}
  #allocation0 [shape = 'u32[]', space=smem, size = 0x4, offset = 0x4, fixed_abs, tag = 'smem constant byte address 0x4 - core index']
  #allocation1 [shape = 'u32[144,128]{1,0:T(1,128)}', space=vmem, size = 0x12000, scoped, tag = 'internal scratch']
  %s0 = inlined_call_operand.hbm [shape: f32[8,256], index: 0, kind: input, shape index: {}]
  %s1 = inlined_call_operand.hbm [shape: f32[8,256], index: 1, kind: input, shape index: {}]
  %s2 = inlined_call_operand.hbm [shape: f32[256,128], index: 2, kind: input, shape index: {}]
  %s3 = inlined_call_operand.hbm [shape: f32[256,128], index: 3, kind: input, shape index: {}]
  %s4 = inlined_call_operand.hbm [shape: f32[256,128], index: 4, kind: input, shape index: {}]
  %s5 = inlined_call_operand.vmem [shape: f32[1,128], index: 5, kind: input, shape index: {}]
  %s6 = inlined_call_operand.vmem [shape: f32[1,128], index: 6, kind: input, shape index: {}]
  %s7 = inlined_call_operand.hbm [shape: f32[8,128], index: 7, kind: output, shape index: {0}]
  %s8 = inlined_call_operand.hbm [shape: f32[8,128], index: 8, kind: output, shape index: {1}]
  %9 = xla_tuple %s7, %s8
  %s10 = sld [smem:[#allocation0]]
  $region74: #{_complex_linear_fwd.1} parent=0
    _
  %s12 = ssub.s32 1, %s10
  %s13 = scalar_select 0, %s12, %s10
  $region1: #{_complex_linear_fwd.1} parent=0
    #allocation2 [shape = 'u8[8192]{0}', space=vmem, size = 0x2000, scoped, tag = 'input window, operand 0, single buffered']
    #allocation3 [shape = 's32[1]{0}', space=sflag, size = 0x4, scoped, tag = 'scoped memory for _complex_linear_fwd.1']
    #allocation4 [shape = 's32[1]{0}', space=sflag, size = 0x4, scoped, tag = 'scoped memory for _complex_linear_fwd.1']
    #allocation5 [shape = 'u8[8192]{0}', space=vmem, size = 0x2000, scoped, tag = 'input window, operand 1, single buffered']
    #allocation6 [shape = 's32[1]{0}', space=sflag, size = 0x4, scoped, tag = 'scoped memory for _complex_linear_fwd.1']
    #allocation7 [shape = 'u8[131072]{0}', space=vmem, size = 0x20000, scoped, tag = 'input window, operand 2, single buffered']
    #allocation8 [shape = 'u8[131072]{0}', space=vmem, size = 0x20000, scoped, tag = 'input window, operand 3, single buffered']
    #allocation9 [shape = 's32[1]{0}', space=sflag, size = 0x4, scoped, tag = 'scoped memory for _complex_linear_fwd.1']
    #allocation10 [shape = 'u8[131072]{0}', space=vmem, size = 0x20000, scoped, tag = 'input window, operand 4, single buffered']
    #allocation11 [shape = 'u8[4096]{0}', space=vmem, size = 0x1000, scoped, tag = 'output window, operand 0, single buffered']
    #allocation12 [shape = 'u8[4096]{0}', space=vmem, size = 0x1000, scoped, tag = 'output window, operand 1, single buffered']
    #allocation13 [shape = 's32[1]{0}', space=sflag, size = 0x4, scoped, tag = 'scoped memory for _complex_linear_fwd.1']
    %14 = vsyncpa [#allocation3], 0
    %15 = vsyncpa [#allocation6], 0
    %16 = vsyncpa [#allocation9], 0
    %17 = vsyncpa [#allocation4], 0
    %18 = vsyncpa [#allocation13], 0
    // Predicated region
    $region2: #{_complex_linear_fwd.1} parent=1 // pred_check
      _
    $region3: #{_complex_linear_fwd.1} parent=1 // pred_check_branch
      %20 = sbr.rel (0) target = $region5
    $region4: #{_complex_linear_fwd.1} parent=1 // pred_region
      %s22 = ssub.s32 256, 256
      %23 = vsyncadd [#allocation3], %s22
      %s25 = sshll.u32 [#allocation2], 4
      %s26 = int_to_ptr.vmem [resolvable:$true] %s25
      %28 = dma.hbm_to_vmem [thread:$0]  %s0, 256, %s26, [#allocation3]
    $region5: #{_complex_linear_fwd.1} parent=1 // pred_fallthru
      _
    // Predicated region
    $region6: #{_complex_linear_fwd.1} parent=1 // pred_check
      _
    $region7: #{_complex_linear_fwd.1} parent=1 // pred_check_branch
      %30 = sbr.rel (0) target = $region9
    $region8: #{_complex_linear_fwd.1} parent=1 // pred_region
      %s32 = ssub.s32 256, 256
      %33 = vsyncadd [#allocation6], %s32
      %s35 = sshll.u32 [#allocation5], 4
      %s36 = int_to_ptr.vmem [resolvable:$true] %s35
      %38 = dma.hbm_to_vmem [thread:$0]  %s1, 256, %s36, [#allocation6]
    $region9: #{_complex_linear_fwd.1} parent=1 // pred_fallthru
      _
    // Predicated region
    $region10: #{_complex_linear_fwd.1} parent=1 // pred_check
      _
    $region11: #{_complex_linear_fwd.1} parent=1 // pred_check_branch
      %40 = sbr.rel (0) target = $region13
    $region12: #{_complex_linear_fwd.1} parent=1 // pred_region
      %s42 = ssub.s32 4096, 4096
      %43 = vsyncadd [#allocation6], %s42
      %s44 = sshll.u32 [#allocation7], 4
      %s45 = int_to_ptr.vmem [resolvable:$true] %s44
      %50 = dma.hbm_to_vmem [thread:$0]  %s2, 4096, %s45, [#allocation6], 128, 128, 8
    $region13: #{_complex_linear_fwd.1} parent=1 // pred_fallthru
      _
    // Predicated region
    $region14: #{_complex_linear_fwd.1} parent=1 // pred_check
      _
    $region15: #{_complex_linear_fwd.1} parent=1 // pred_check_branch
      %52 = sbr.rel (0) target = $region17
    $region16: #{_complex_linear_fwd.1} parent=1 // pred_region
      %s54 = ssub.s32 4096, 4096
      %55 = vsyncadd [#allocation9], %s54
      %s56 = sshll.u32 [#allocation8], 4
      %s57 = int_to_ptr.vmem [resolvable:$true] %s56
      %62 = dma.hbm_to_vmem [thread:$0]  %s3, 4096, %s57, [#allocation9], 128, 128, 8
    $region17: #{_complex_linear_fwd.1} parent=1 // pred_fallthru
      _
    // Predicated region
    $region18: #{_complex_linear_fwd.1} parent=1 // pred_check
      _
    $region19: #{_complex_linear_fwd.1} parent=1 // pred_check_branch
      %64 = sbr.rel (0) target = $region21
    $region20: #{_complex_linear_fwd.1} parent=1 // pred_region
      %s66 = ssub.s32 4096, 4096
      %67 = vsyncadd [#allocation9], %s66
      %s68 = sshll.u32 [#allocation10], 4
      %s69 = int_to_ptr.vmem [resolvable:$true] %s68
      %74 = dma.hbm_to_vmem [thread:$0]  %s4, 4096, %s69, [#allocation9], 128, 128, 8
    $region21: #{_complex_linear_fwd.1} parent=1 // pred_fallthru
      _
    // Predicated region
    $region22: #{_complex_linear_fwd.1} parent=1 // pred_check
      _
    $region23: #{_complex_linear_fwd.1} parent=1 // pred_check_branch
      %76 = sbr.rel (0) target = $region25
    $region24: #{_complex_linear_fwd.1} parent=1 // pred_region
      _
    $region25: #{_complex_linear_fwd.1} parent=1 // pred_fallthru
      _
    // Predicated region
    $region26: #{_complex_linear_fwd.1} parent=1 // pred_check
      _
    $region27: #{_complex_linear_fwd.1} parent=1 // pred_check_branch
      %78 = sbr.rel (0) target = $region29
    $region28: #{_complex_linear_fwd.1} parent=1 // pred_region
      _
    $region29: #{_complex_linear_fwd.1} parent=1 // pred_fallthru
      _
    // Predicated region
    $region30: #{_complex_linear_fwd.1} parent=1 // pred_check
      _
    $region31: #{_complex_linear_fwd.1} parent=1 // pred_check_branch
      %80 = sbr.rel (0) target = $region33
    $region32: #{_complex_linear_fwd.1} parent=1 // pred_region
      %81 = dma.done [#allocation3], 256
    $region33: #{_complex_linear_fwd.1} parent=1 // pred_fallthru
      _
    // Predicated region
    $region34: #{_complex_linear_fwd.1} parent=1 // pred_check
      _
    $region35: #{_complex_linear_fwd.1} parent=1 // pred_check_branch
      %83 = sbr.rel (0) target = $region37
    $region36: #{_complex_linear_fwd.1} parent=1 // pred_region
      %84 = dma.done [#allocation6], 256
    $region37: #{_complex_linear_fwd.1} parent=1 // pred_fallthru
      _
    // Predicated region
    $region38: #{_complex_linear_fwd.1} parent=1 // pred_check
      _
    $region39: #{_complex_linear_fwd.1} parent=1 // pred_check_branch
      %86 = sbr.rel (0) target = $region41
    $region40: #{_complex_linear_fwd.1} parent=1 // pred_region
      %87 = dma.done [#allocation6], 4096
    $region41: #{_complex_linear_fwd.1} parent=1 // pred_fallthru
      _
    // Predicated region
    $region42: #{_complex_linear_fwd.1} parent=1 // pred_check
      _
    $region43: #{_complex_linear_fwd.1} parent=1 // pred_check_branch
      %89 = sbr.rel (0) target = $region45
    $region44: #{_complex_linear_fwd.1} parent=1 // pred_region
      %90 = dma.done [#allocation9], 4096
    $region45: #{_complex_linear_fwd.1} parent=1 // pred_fallthru
      _
    // Predicated region
    $region46: #{_complex_linear_fwd.1} parent=1 // pred_check
      _
    $region47: #{_complex_linear_fwd.1} parent=1 // pred_check_branch
      %92 = sbr.rel (0) target = $region49
    $region48: #{_complex_linear_fwd.1} parent=1 // pred_region
      %93 = dma.done [#allocation9], 4096
    $region49: #{_complex_linear_fwd.1} parent=1 // pred_fallthru
      _
    %p94 = scmp.eq.s32.totalorder 0, 0
    // Predicated region
    $region50: #{_complex_linear_fwd.1} parent=1 // pred_check
      %p95 = pneg %p94
    $region51: #{_complex_linear_fwd.1} parent=1 // pred_check_branch
      %97 = sbr.rel (%p95) target = $region53
    $region52: #{_complex_linear_fwd.1} parent=1 // pred_region
      %98 = vst [vmem:[#allocation11] sm:$0xff] 0.0
      %99 = vst [vmem:[#allocation12] sm:$0xff] 0.0
    $region53: #{_complex_linear_fwd.1} parent=1 // pred_fallthru
      _
    %v100 = vld [vmem:[#allocation2] sm:$0xff]
    %v101 = vld [vmem:[#allocation2 + $0x8] sm:$0xff]
    %v102 = vld [vmem:[#allocation5] sm:$0xff]
    %v103 = vld [vmem:[#allocation5 + $0x8] sm:$0xff]
    %v104 = vadd.f32 %v100, %v102
    %v105 = vadd.f32 %v101, %v103
    %v106 = vld [vmem:[#allocation7] sm:$0xff]
    %v107 = vld [vmem:[#allocation7 + $0x8] sm:$0xff]
    %v108 = vld [vmem:[#allocation7 + $0x10] sm:$0xff]
    %v109 = vld [vmem:[#allocation7 + $0x18] sm:$0xff]
    %v110 = vld [vmem:[#allocation7 + $0x20] sm:$0xff]
    %v111 = vld [vmem:[#allocation7 + $0x28] sm:$0xff]
    %v112 = vld [vmem:[#allocation7 + $0x30] sm:$0xff]
    %v113 = vld [vmem:[#allocation7 + $0x38] sm:$0xff]
    %v114 = vld [vmem:[#allocation7 + $0x40] sm:$0xff]
    %v115 = vld [vmem:[#allocation7 + $0x48] sm:$0xff]
    %v116 = vld [vmem:[#allocation7 + $0x50] sm:$0xff]
    %v117 = vld [vmem:[#allocation7 + $0x58] sm:$0xff]
    %v118 = vld [vmem:[#allocation7 + $0x60] sm:$0xff]
    %v119 = vld [vmem:[#allocation7 + $0x68] sm:$0xff]
    %v120 = vld [vmem:[#allocation7 + $0x70] sm:$0xff]
    %v121 = vld [vmem:[#allocation7 + $0x78] sm:$0xff]
    %v122 = vld [vmem:[#allocation7 + $0x80] sm:$0xff]
    %v123 = vld [vmem:[#allocation7 + $0x88] sm:$0xff]
    %v124 = vld [vmem:[#allocation7 + $0x90] sm:$0xff]
    %v125 = vld [vmem:[#allocation7 + $0x98] sm:$0xff]
    %v126 = vld [vmem:[#allocation7 + $0xa0] sm:$0xff]
    %v127 = vld [vmem:[#allocation7 + $0xa8] sm:$0xff]
    %v128 = vld [vmem:[#allocation7 + $0xb0] sm:$0xff]
    %v129 = vld [vmem:[#allocation7 + $0xb8] sm:$0xff]
    %v130 = vld [vmem:[#allocation7 + $0xc0] sm:$0xff]
    %v131 = vld [vmem:[#allocation7 + $0xc8] sm:$0xff]
    %v132 = vld [vmem:[#allocation7 + $0xd0] sm:$0xff]
    %v133 = vld [vmem:[#allocation7 + $0xd8] sm:$0xff]
    %v134 = vld [vmem:[#allocation7 + $0xe0] sm:$0xff]
    %v135 = vld [vmem:[#allocation7 + $0xe8] sm:$0xff]
    %v136 = vld [vmem:[#allocation7 + $0xf0] sm:$0xff]
    %v137 = vld [vmem:[#allocation7 + $0xf8] sm:$0xff]
    %138 = vmatprep.subr.mxu0 0.0
    %139 = vmatpush1.msra.mxu0 %v121
    %140 = vmatprep.subr.mxu0 0.0
    %141 = vmatpush1.msra.mxu0 %v120
    %142 = vmatprep.subr.mxu0 0.0
    %143 = vmatpush1.msra.mxu0 %v119
    %144 = vmatprep.subr.mxu0 0.0
    %145 = vmatpush1.msra.mxu0 %v118
    %146 = vmatprep.subr.mxu0 0.0
    %147 = vmatpush1.msra.mxu0 %v117
    %148 = vmatprep.subr.mxu0 0.0
    %149 = vmatpush1.msra.mxu0 %v116
    %150 = vmatprep.subr.mxu0 0.0
    %151 = vmatpush1.msra.mxu0 %v115
    %152 = vmatprep.subr.mxu0 0.0
    %153 = vmatpush1.msra.mxu0 %v114
    %154 = vmatprep.subr.mxu0 0.0
    %155 = vmatpush1.msra.mxu0 %v113
    %156 = vmatprep.subr.mxu0 0.0
    %157 = vmatpush1.msra.mxu0 %v112
    %158 = vmatprep.subr.mxu0 0.0
    %159 = vmatpush1.msra.mxu0 %v111
    %160 = vmatprep.subr.mxu0 0.0
    %161 = vmatpush1.msra.mxu0 %v110
    %162 = vmatprep.subr.mxu0 0.0
    %163 = vmatpush1.msra.mxu0 %v109
    %164 = vmatprep.subr.mxu0 0.0
    %165 = vmatpush1.msra.mxu0 %v108
    %166 = vmatprep.subr.mxu0 0.0
    %167 = vmatpush1.msra.mxu0 %v107
    %168 = vmatprep.subr.mxu0 0.0
    %169 = vmatpush1.msra.mxu0 %v106
    %170 = vmatprep.subr.mxu0 0.0
    %171 = vmatpush2.msra.mxu0 %v137
    %172 = vmatprep.subr.mxu0 0.0
    %173 = vmatpush2.msra.mxu0 %v136
    %174 = vmatprep.subr.mxu0 0.0
    %175 = vmatpush2.msra.mxu0 %v135
    %176 = vmatprep.subr.mxu0 0.0
    %177 = vmatpush2.msra.mxu0 %v134
    %178 = vmatprep.subr.mxu0 0.0
    %179 = vmatpush2.msra.mxu0 %v133
    %180 = vmatprep.subr.mxu0 0.0
    %181 = vmatpush2.msra.mxu0 %v132
    %182 = vmatprep.subr.mxu0 0.0
    %183 = vmatpush2.msra.mxu0 %v131
    %184 = vmatprep.subr.mxu0 0.0
    %185 = vmatpush2.msra.mxu0 %v130
    %186 = vmatprep.subr.mxu0 0.0
    %187 = vmatpush2.msra.mxu0 %v129
    %188 = vmatprep.subr.mxu0 0.0
    %189 = vmatpush2.msra.mxu0 %v128
    %190 = vmatprep.subr.mxu0 0.0
    %191 = vmatpush2.msra.mxu0 %v127
    %192 = vmatprep.subr.mxu0 0.0
    %193 = vmatpush2.msra.mxu0 %v126
    %194 = vmatprep.subr.mxu0 0.0
    %195 = vmatpush2.msra.mxu0 %v125
    %196 = vmatprep.subr.mxu0 0.0
    %197 = vmatpush2.msra.mxu0 %v124
    %198 = vmatprep.subr.mxu0 0.0
    %199 = vmatpush2.msra.mxu0 %v123
    %200 = vmatprep.subr.mxu0 0.0
    %201 = vmatpush2.msra.mxu0 %v122
    %202 = vmatprep.mubr.f32.mxu0 %v105
    %203 = vmatmul.mubr.f32.gmra.mxu0 %v104
    %v204 = vpop.f32.mrf.mxu0
    %v205 = vadd.f32 0.0, %v204
    %v206 = vpop.f32.mrf.mxu0
    %207 = vdwg.mxu0
    %v208 = vld [vmem:[#allocation8] sm:$0xff]
    %v209 = vld [vmem:[#allocation8 + $0x8] sm:$0xff]
    %v210 = vld [vmem:[#allocation8 + $0x10] sm:$0xff]
    %v211 = vld [vmem:[#allocation8 + $0x18] sm:$0xff]
    %v212 = vld [vmem:[#allocation8 + $0x20] sm:$0xff]
    %v213 = vld [vmem:[#allocation8 + $0x28] sm:$0xff]
    %v214 = vld [vmem:[#allocation8 + $0x30] sm:$0xff]
    %v215 = vld [vmem:[#allocation8 + $0x38] sm:$0xff]
    %v216 = vld [vmem:[#allocation8 + $0x40] sm:$0xff]
    %v217 = vld [vmem:[#allocation8 + $0x48] sm:$0xff]
    %v218 = vld [vmem:[#allocation8 + $0x50] sm:$0xff]
    %v219 = vld [vmem:[#allocation8 + $0x58] sm:$0xff]
    %v220 = vld [vmem:[#allocation8 + $0x60] sm:$0xff]
    %v221 = vld [vmem:[#allocation8 + $0x68] sm:$0xff]
    %v222 = vld [vmem:[#allocation8 + $0x70] sm:$0xff]
    %v223 = vld [vmem:[#allocation8 + $0x78] sm:$0xff]
    %v224 = vld [vmem:[#allocation8 + $0x80] sm:$0xff]
    %v225 = vld [vmem:[#allocation8 + $0x88] sm:$0xff]
    %v226 = vld [vmem:[#allocation8 + $0x90] sm:$0xff]
    %v227 = vld [vmem:[#allocation8 + $0x98] sm:$0xff]
    %v228 = vld [vmem:[#allocation8 + $0xa0] sm:$0xff]
    %v229 = vld [vmem:[#allocation8 + $0xa8] sm:$0xff]
    %v230 = vld [vmem:[#allocation8 + $0xb0] sm:$0xff]
    %v231 = vld [vmem:[#allocation8 + $0xb8] sm:$0xff]
    %v232 = vld [vmem:[#allocation8 + $0xc0] sm:$0xff]
    %v233 = vld [vmem:[#allocation8 + $0xc8] sm:$0xff]
    %v234 = vld [vmem:[#allocation8 + $0xd0] sm:$0xff]
    %v235 = vld [vmem:[#allocation8 + $0xd8] sm:$0xff]
    %v236 = vld [vmem:[#allocation8 + $0xe0] sm:$0xff]
    %v237 = vld [vmem:[#allocation8 + $0xe8] sm:$0xff]
    %v238 = vld [vmem:[#allocation8 + $0xf0] sm:$0xff]
    %v239 = vld [vmem:[#allocation8 + $0xf8] sm:$0xff]
    %240 = vmatprep.subr.mxu0 0.0
    %241 = vmatpush1.msra.mxu0 %v223
    %242 = vmatprep.subr.mxu0 0.0
    %243 = vmatpush1.msra.mxu0 %v222
    %244 = vmatprep.subr.mxu0 0.0
    %245 = vmatpush1.msra.mxu0 %v221
    %246 = vmatprep.subr.mxu0 0.0
    %247 = vmatpush1.msra.mxu0 %v220
    %248 = vmatprep.subr.mxu0 0.0
    %249 = vmatpush1.msra.mxu0 %v219
    %250 = vmatprep.subr.mxu0 0.0
    %251 = vmatpush1.msra.mxu0 %v218
    %252 = vmatprep.subr.mxu0 0.0
    %253 = vmatpush1.msra.mxu0 %v217
    %254 = vmatprep.subr.mxu0 0.0
    %255 = vmatpush1.msra.mxu0 %v216
    %256 = vmatprep.subr.mxu0 0.0
    %257 = vmatpush1.msra.mxu0 %v215
    %258 = vmatprep.subr.mxu0 0.0
    %259 = vmatpush1.msra.mxu0 %v214
    %260 = vmatprep.subr.mxu0 0.0
    %261 = vmatpush1.msra.mxu0 %v213
    %262 = vmatprep.subr.mxu0 0.0
    %263 = vmatpush1.msra.mxu0 %v212
    %264 = vmatprep.subr.mxu0 0.0
    %265 = vmatpush1.msra.mxu0 %v211
    %266 = vmatprep.subr.mxu0 0.0
    %267 = vmatpush1.msra.mxu0 %v210
    %268 = vmatprep.subr.mxu0 0.0
    %269 = vmatpush1.msra.mxu0 %v209
    %270 = vmatprep.subr.mxu0 0.0
    %271 = vmatpush1.msra.mxu0 %v208
    %272 = vmatprep.subr.mxu0 0.0
    %273 = vmatpush2.msra.mxu0 %v239
    %274 = vmatprep.subr.mxu0 0.0
    %275 = vmatpush2.msra.mxu0 %v238
    %276 = vmatprep.subr.mxu0 0.0
    %277 = vmatpush2.msra.mxu0 %v237
    %278 = vmatprep.subr.mxu0 0.0
    %279 = vmatpush2.msra.mxu0 %v236
    %280 = vmatprep.subr.mxu0 0.0
    %281 = vmatpush2.msra.mxu0 %v235
    %282 = vmatprep.subr.mxu0 0.0
    %283 = vmatpush2.msra.mxu0 %v234
    %284 = vmatprep.subr.mxu0 0.0
    %285 = vmatpush2.msra.mxu0 %v233
    %286 = vmatprep.subr.mxu0 0.0
    %287 = vmatpush2.msra.mxu0 %v232
    %288 = vmatprep.subr.mxu0 0.0
    %289 = vmatpush2.msra.mxu0 %v231
    %290 = vmatprep.subr.mxu0 0.0
    %291 = vmatpush2.msra.mxu0 %v230
    %292 = vmatprep.subr.mxu0 0.0
    %293 = vmatpush2.msra.mxu0 %v229
    %294 = vmatprep.subr.mxu0 0.0
    %295 = vmatpush2.msra.mxu0 %v228
    %296 = vmatprep.subr.mxu0 0.0
    %297 = vmatpush2.msra.mxu0 %v227
    %298 = vmatprep.subr.mxu0 0.0
    %299 = vmatpush2.msra.mxu0 %v226
    %300 = vmatprep.subr.mxu0 0.0
    %301 = vmatpush2.msra.mxu0 %v225
    %302 = vmatprep.subr.mxu0 0.0
    %303 = vmatpush2.msra.mxu0 %v224
    %304 = vmatprep.mubr.f32.mxu0 %v103
    %305 = vmatmul.mubr.f32.gmra.mxu0 %v102
    %v306 = vpop.f32.mrf.mxu0
    %v307 = vadd.f32 0.0, %v306
    %v308 = vpop.f32.mrf.mxu0
    %309 = vdwg.mxu0
    %v310 = vld [vmem:[#allocation10] sm:$0xff]
    %v311 = vld [vmem:[#allocation10 + $0x8] sm:$0xff]
    %v312 = vld [vmem:[#allocation10 + $0x10] sm:$0xff]
    %v313 = vld [vmem:[#allocation10 + $0x18] sm:$0xff]
    %v314 = vld [vmem:[#allocation10 + $0x20] sm:$0xff]
    %v315 = vld [vmem:[#allocation10 + $0x28] sm:$0xff]
    %v316 = vld [vmem:[#allocation10 + $0x30] sm:$0xff]
    %v317 = vld [vmem:[#allocation10 + $0x38] sm:$0xff]
    %v318 = vld [vmem:[#allocation10 + $0x40] sm:$0xff]
    %v319 = vld [vmem:[#allocation10 + $0x48] sm:$0xff]
    %v320 = vld [vmem:[#allocation10 + $0x50] sm:$0xff]
    %v321 = vld [vmem:[#allocation10 + $0x58] sm:$0xff]
    %v322 = vld [vmem:[#allocation10 + $0x60] sm:$0xff]
    %v323 = vld [vmem:[#allocation10 + $0x68] sm:$0xff]
    %v324 = vld [vmem:[#allocation10 + $0x70] sm:$0xff]
    %v325 = vld [vmem:[#allocation10 + $0x78] sm:$0xff]
    %v326 = vld [vmem:[#allocation10 + $0x80] sm:$0xff]
    %v327 = vld [vmem:[#allocation10 + $0x88] sm:$0xff]
    %v328 = vld [vmem:[#allocation10 + $0x90] sm:$0xff]
    %v329 = vld [vmem:[#allocation10 + $0x98] sm:$0xff]
    %v330 = vld [vmem:[#allocation10 + $0xa0] sm:$0xff]
    %v331 = vld [vmem:[#allocation10 + $0xa8] sm:$0xff]
    %v332 = vld [vmem:[#allocation10 + $0xb0] sm:$0xff]
    %v333 = vld [vmem:[#allocation10 + $0xb8] sm:$0xff]
    %v334 = vld [vmem:[#allocation10 + $0xc0] sm:$0xff]
    %v335 = vld [vmem:[#allocation10 + $0xc8] sm:$0xff]
    %v336 = vld [vmem:[#allocation10 + $0xd0] sm:$0xff]
    %v337 = vld [vmem:[#allocation10 + $0xd8] sm:$0xff]
    %v338 = vld [vmem:[#allocation10 + $0xe0] sm:$0xff]
    %v339 = vld [vmem:[#allocation10 + $0xe8] sm:$0xff]
    %v340 = vld [vmem:[#allocation10 + $0xf0] sm:$0xff]
    %v341 = vld [vmem:[#allocation10 + $0xf8] sm:$0xff]
    %342 = vmatprep.subr.mxu0 0.0
    %343 = vmatpush1.msra.mxu0 %v325
    %344 = vmatprep.subr.mxu0 0.0
    %345 = vmatpush1.msra.mxu0 %v324
    %346 = vmatprep.subr.mxu0 0.0
    %347 = vmatpush1.msra.mxu0 %v323
    %348 = vmatprep.subr.mxu0 0.0
    %349 = vmatpush1.msra.mxu0 %v322
    %350 = vmatprep.subr.mxu0 0.0
    %351 = vmatpush1.msra.mxu0 %v321
    %352 = vmatprep.subr.mxu0 0.0
    %353 = vmatpush1.msra.mxu0 %v320
    %354 = vmatprep.subr.mxu0 0.0
    %355 = vmatpush1.msra.mxu0 %v319
    %356 = vmatprep.subr.mxu0 0.0
    %357 = vmatpush1.msra.mxu0 %v318
    %358 = vmatprep.subr.mxu0 0.0
    %359 = vmatpush1.msra.mxu0 %v317
    %360 = vmatprep.subr.mxu0 0.0
    %361 = vmatpush1.msra.mxu0 %v316
    %362 = vmatprep.subr.mxu0 0.0
    %363 = vmatpush1.msra.mxu0 %v315
    %364 = vmatprep.subr.mxu0 0.0
    %365 = vmatpush1.msra.mxu0 %v314
    %366 = vmatprep.subr.mxu0 0.0
    %367 = vmatpush1.msra.mxu0 %v313
    %368 = vmatprep.subr.mxu0 0.0
    %369 = vmatpush1.msra.mxu0 %v312
    %370 = vmatprep.subr.mxu0 0.0
    %371 = vmatpush1.msra.mxu0 %v311
    %372 = vmatprep.subr.mxu0 0.0
    %373 = vmatpush1.msra.mxu0 %v310
    %374 = vmatprep.subr.mxu0 0.0
    %375 = vmatpush2.msra.mxu0 %v341
    %376 = vmatprep.subr.mxu0 0.0
    %377 = vmatpush2.msra.mxu0 %v340
    %378 = vmatprep.subr.mxu0 0.0
    %379 = vmatpush2.msra.mxu0 %v339
    %380 = vmatprep.subr.mxu0 0.0
    %381 = vmatpush2.msra.mxu0 %v338
    %382 = vmatprep.subr.mxu0 0.0
    %383 = vmatpush2.msra.mxu0 %v337
    %384 = vmatprep.subr.mxu0 0.0
    %385 = vmatpush2.msra.mxu0 %v336
    %386 = vmatprep.subr.mxu0 0.0
    %387 = vmatpush2.msra.mxu0 %v335
    %388 = vmatprep.subr.mxu0 0.0
    %389 = vmatpush2.msra.mxu0 %v334
    %390 = vmatprep.subr.mxu0 0.0
    %391 = vmatpush2.msra.mxu0 %v333
    %392 = vmatprep.subr.mxu0 0.0
    %393 = vmatpush2.msra.mxu0 %v332
    %394 = vmatprep.subr.mxu0 0.0
    %395 = vmatpush2.msra.mxu0 %v331
    %396 = vmatprep.subr.mxu0 0.0
    %397 = vmatpush2.msra.mxu0 %v330
    %398 = vmatprep.subr.mxu0 0.0
    %399 = vmatpush2.msra.mxu0 %v329
    %400 = vmatprep.subr.mxu0 0.0
    %401 = vmatpush2.msra.mxu0 %v328
    %402 = vmatprep.subr.mxu0 0.0
    %403 = vmatpush2.msra.mxu0 %v327
    %404 = vmatprep.subr.mxu0 0.0
    %405 = vmatpush2.msra.mxu0 %v326
    %406 = vmatprep.mubr.f32.mxu0 %v101
    %407 = vmatmul.mubr.f32.gmra.mxu0 %v100
    %v408 = vpop.f32.mrf.mxu0
    %v409 = vadd.f32 0.0, %v408
    %v410 = vpop.f32.mrf.mxu0
    %411 = vdwg.mxu0
    %v412 = vld [vmem:[#allocation11] sm:$0xff]
    %v413 = vadd.f32 %v412, %v205
    %414 = vst [vmem:[#allocation11] sm:$0xff] %v413
    %v415 = vld [vmem:[#allocation12] sm:$0xff]
    %v416 = vadd.f32 %v415, %v205
    %417 = vst [vmem:[#allocation12] sm:$0xff] %v416
    %v418 = vld [vmem:[#allocation11] sm:$0xff]
    %v419 = vsub.f32 %v418, %v307
    %420 = vst [vmem:[#allocation11] sm:$0xff] %v419
    %v421 = vld [vmem:[#allocation12] sm:$0xff]
    %v422 = vadd.f32 %v421, %v409
    %423 = vst [vmem:[#allocation12] sm:$0xff] %v422
    // Predicated region
    $region54: #{_complex_linear_fwd.1} parent=1 // pred_check
      %p424 = pneg %p94
    $region55: #{_complex_linear_fwd.1} parent=1 // pred_check_branch
      %426 = sbr.rel (%p424) target = $region57
    $region56: #{_complex_linear_fwd.1} parent=1 // pred_region
      %v427 = vld [vmem:[#allocation11] sm:$0xff]
      %v428 = vld [vmem:[%s5] sm:$0x1]
      %v430 = vlaneseq
      %v431 = vshrl.u32 %v430, 7
      %v432 = vsub.s32 0, %v431
      %v433 = vrot.slane %v428, %v432
      %v435 = vadd.f32 %v427, %v433
      %436 = vst [vmem:[#allocation11] sm:$0xff] %v435
      %v437 = vld [vmem:[#allocation12] sm:$0xff]
      %v438 = vld [vmem:[%s6] sm:$0x1]
      %v440 = vlaneseq
      %v441 = vshrl.u32 %v440, 7
      %v442 = vsub.s32 0, %v441
      %v443 = vrot.slane %v438, %v442
      %v445 = vadd.f32 %v437, %v443
      %446 = vst [vmem:[#allocation12] sm:$0xff] %v445
    $region57: #{_complex_linear_fwd.1} parent=1 // pred_fallthru
      _
    // Predicated region
    $region58: #{_complex_linear_fwd.1} parent=1 // pred_check
      _
    $region59: #{_complex_linear_fwd.1} parent=1 // pred_check_branch
      %448 = sbr.rel (0) target = $region61
    $region60: #{_complex_linear_fwd.1} parent=1 // pred_region
      %s450 = ssub.s32 128, 128
      %451 = vsyncadd [#allocation4], %s450
      %s453 = sshll.u32 [#allocation11], 4
      %s454 = int_to_ptr.vmem [resolvable:$true] %s453
      %456 = dma.vmem_to_hbm [thread:$0]  %s454, 128, %s7, [#allocation4]
    $region61: #{_complex_linear_fwd.1} parent=1 // pred_fallthru
      _
    // Predicated region
    $region62: #{_complex_linear_fwd.1} parent=1 // pred_check
      _
    $region63: #{_complex_linear_fwd.1} parent=1 // pred_check_branch
      %458 = sbr.rel (0) target = $region65
    $region64: #{_complex_linear_fwd.1} parent=1 // pred_region
      %s460 = ssub.s32 128, 128
      %461 = vsyncadd [#allocation13], %s460
      %s463 = sshll.u32 [#allocation12], 4
      %s464 = int_to_ptr.vmem [resolvable:$true] %s463
      %466 = dma.vmem_to_hbm [thread:$0]  %s464, 128, %s8, [#allocation13]
    $region65: #{_complex_linear_fwd.1} parent=1 // pred_fallthru
      _
    // Predicated region
    $region66: #{_complex_linear_fwd.1} parent=1 // pred_check
      _
    $region67: #{_complex_linear_fwd.1} parent=1 // pred_check_branch
      %468 = sbr.rel (0) target = $region69
    $region68: #{_complex_linear_fwd.1} parent=1 // pred_region
      %469 = dma.done [#allocation4], 128
    $region69: #{_complex_linear_fwd.1} parent=1 // pred_fallthru
      _
    // Predicated region
    $region70: #{_complex_linear_fwd.1} parent=1 // pred_check
      _
    $region71: #{_complex_linear_fwd.1} parent=1 // pred_check_branch
      %471 = sbr.rel (0) target = $region73
    $region72: #{_complex_linear_fwd.1} parent=1 // pred_region
      %472 = dma.done [#allocation13], 128
    $region73: #{_complex_linear_fwd.1} parent=1 // pred_fallthru
      _
    %473 = vsyncpa [#allocation3], 1
    %474 = vsyncpa [#allocation6], 1
    %475 = vsyncpa [#allocation9], 1
    %476 = vsyncpa [#allocation4], 1
    %477 = vsyncpa [#allocation13], 1

</llo_original>
